<compile_context>
chip_gen: v7x
topology: tpu7x:2x2x1
jax: 0.10.0
libtpu: 0.0.40
codegen_flags: <defaults>
</compile_context>

<pallas_src>
import functools
import math

import jax
import jax.numpy as jnp
from jax.experimental import pallas as pl
from jax.experimental.pallas import tpu as pltpu


_PIPELINE_THRESHOLD_BYTES = 2 * 1024 * 1024   # below this, one block is fine
_MIN_GRID_BLOCKS = 8                          # target grid steps for overlap


def _hw_budgets():
    """Return (per-block byte budget, vmem_limit_bytes), generation dependent."""
    vmem = None
    try:
        vmem = int(getattr(pltpu.get_tpu_info(), "vmem_capacity_bytes", 0)) or None
    except Exception:
        vmem = None
    if vmem is None:
        try:
            kind = jax.devices()[0].device_kind.lower()
            vmem = 64 * 1024 * 1024 if "v7" in kind else 128 * 1024 * 1024
        except Exception:
            vmem = 64 * 1024 * 1024           # unknown: be conservative
    if vmem <= 64 * 1024 * 1024:              # v7x-class: 64 MiB per TensorCore
        return 4 * 1024 * 1024, 40 * 1024 * 1024
    return 8 * 1024 * 1024, 96 * 1024 * 1024  # v5e / v6e: 128 MiB VMEM


def _bf16_compute_supported():
    """True on chips whose VPU/EUP handle bf16 natively (v6e / v7x)."""
    try:
        kind = jax.devices()[0].device_kind.lower()
    except Exception:
        return False
    return not any(tag in kind for tag in ("v2", "v3", "v4", "v5"))


def _sublane_multiple(dtype) -> int:
    # f32 -> 8, bf16 -> 16, int8/fp8 -> 32 (min sublane tile per dtype packing)
    return max(8, 32 // jnp.dtype(dtype).itemsize)


def _largest_divisor_leq(n: int, cap: int) -> int:
    d = max(1, min(n, cap))
    while n % d != 0:
        d -= 1
    return d


def _pick_row_tile(rows, row_bytes, sub_mult, total_bytes, lane_blocks, block_budget):
    """Rows per block: sublane-aligned, VMEM-budgeted, and (for non-tiny tensors)
    capped so the total grid has >= _MIN_GRID_BLOCKS (even-count) steps."""
    if rows <= sub_mult:
        return rows
    budget_rows = max(sub_mult,
                      ((block_budget // max(1, row_bytes)) // sub_mult) * sub_mult)
    if total_bytes < _PIPELINE_THRESHOLD_BYTES:
        want_blocks = 1
    else:
        want_blocks = max(1, pl.cdiv(_MIN_GRID_BLOCKS, lane_blocks))
        if (want_blocks * lane_blocks) % 2:    # prefer an even grid (v7x megacore)
            want_blocks += 1
    if want_blocks > 1:
        cap = max(sub_mult, ((rows // want_blocks) // sub_mult) * sub_mult)
    else:
        cap = rows
    tr = min(rows, budget_rows, cap)
    if tr < rows:
        tr = max(sub_mult, (tr // sub_mult) * sub_mult)
    return tr


# ---------------------------------------------------------------------------
# Kernels
# ---------------------------------------------------------------------------

def _glu_split_kernel(a_ref, b_ref, o_ref, *, upcast):
    # (tr, tm) aligned blocks: halves already separated at the BlockSpec level.
    a = a_ref[...]
    b = b_ref[...]
    if upcast:
        b = b.astype(jnp.float32)
    o_ref[...] = (a * jax.nn.sigmoid(b)).astype(o_ref.dtype)


def _glu_fused_kernel(x_ref, o_ref, *, m, upcast):
    # x_ref: (tr, 2*m) contiguous rows; slices are lane-aligned when m % 128 == 0.
    a = x_ref[:, :m]
    b = x_ref[:, m:]
    if upcast:
        b = b.astype(jnp.float32)
    o_ref[...] = (a * jax.nn.sigmoid(b)).astype(o_ref.dtype)


def _glu_folded_kernel(x_ref, o_ref, *, m, g, upcast):
    # x_ref: (tr, g*2*m) -- g original rows folded into the lane axis.
    # Output (tr, g*m) is a multiple of 128 lanes -> unmasked full-width stores.
    parts = []
    for j in range(g):
        a = x_ref[:, j * 2 * m:j * 2 * m + m]
        b = x_ref[:, j * 2 * m + m:(j + 1) * 2 * m]
        if upcast:
            b = b.astype(jnp.float32)
        parts.append((a * jax.nn.sigmoid(b)).astype(o_ref.dtype))
    o_ref[...] = jnp.concatenate(parts, axis=-1)


# ---------------------------------------------------------------------------
# Wrapper
# ---------------------------------------------------------------------------

def glu_pallas(x, dim=-1):
    ndim = x.ndim
    axis = dim % ndim
    D = x.shape[axis]
    assert D % 2 == 0, "GLU requires an even split dimension"
    half = D // 2

    R = int(math.prod(x.shape[:axis]))
    C = int(math.prod(x.shape[axis + 1:]))
    M = half * C

    dtype = jnp.dtype(x.dtype)
    itemsize = dtype.itemsize
    sub_mult = _sublane_multiple(dtype)
    block_budget, vmem_limit = _hw_budgets()
    total_bytes = x.size * itemsize
    upcast = (dtype != jnp.dtype(jnp.float32)) and not (
        dtype == jnp.dtype(jnp.bfloat16) and _bf16_compute_supported())

    # Free reshape (contiguous split/merge, no transpose): row r = [a | b].
    x2 = x.reshape(R, 2 * M)

    if M % 128 == 0:
        row_bytes_full = 2 * M * itemsize
        if sub_mult * row_bytes_full <= block_budget:
            # ---- fused contiguous path: one burst per step, aligned views ----
            tr = _pick_row_tile(R, row_bytes_full, sub_mult, total_bytes, 1,
                                block_budget)
            grid = (pl.cdiv(R, tr),)
            out2 = pl.pallas_call(
                functools.partial(_glu_fused_kernel, m=M, upcast=upcast),
                out_shape=jax.ShapeDtypeStruct((R, M), x.dtype),
                grid_spec=pltpu.PrefetchScalarGridSpec(
                    num_scalar_prefetch=0,
                    grid=grid,
                    in_specs=[pl.BlockSpec((tr, 2 * M), lambda i: (i, 0))],
                    out_specs=pl.BlockSpec((tr, M), lambda i: (i, 0)),
                ),
                compiler_params=pltpu.CompilerParams(
                    dimension_semantics=("parallel",),
                    vmem_limit_bytes=vmem_limit,
                ),
            )(x2)
        else:
            # ---- lane-split path: rows too wide, split halves via BlockSpecs ----
            lane_cap = max(128, block_budget // (itemsize * sub_mult))
            tm = 128 * _largest_divisor_leq(M // 128, max(1, lane_cap // 128))
            lane_blocks = M // tm
            kb = lane_blocks  # block offset of the b-half along the lane axis
            tr = _pick_row_tile(R, tm * itemsize, sub_mult, total_bytes,
                                lane_blocks, block_budget)
            grid = (pl.cdiv(R, tr), lane_blocks)
            out2 = pl.pallas_call(
                functools.partial(_glu_split_kernel, upcast=upcast),
                out_shape=jax.ShapeDtypeStruct((R, M), x.dtype),
                grid_spec=pltpu.PrefetchScalarGridSpec(
                    num_scalar_prefetch=0,
                    grid=grid,
                    in_specs=[
                        pl.BlockSpec((tr, tm), lambda i, k: (i, k)),
                        pl.BlockSpec((tr, tm), lambda i, k, kb=kb: (i, k + kb)),
                    ],
                    out_specs=pl.BlockSpec((tr, tm), lambda i, k: (i, k)),
                ),
                compiler_params=pltpu.CompilerParams(
                    dimension_semantics=("parallel", "parallel"),
                    vmem_limit_bytes=vmem_limit,
                ),
            )(x2, x2)
    else:
        g = math.lcm(M, 128) // M
        if 1 < g <= 128 and R % g == 0:
            # ---- lane-dense folded path: unmasked full-width output stores ----
            Rf = R // g
            x2f = x2.reshape(Rf, g * 2 * M)
            # input + relayout temps (f32) + output per folded row
            row_bytes = g * (2 * M * itemsize + 2 * M * 4 + M * itemsize)
            tr = _pick_row_tile(Rf, row_bytes, sub_mult, total_bytes, 1,
                                block_budget)
            grid = (pl.cdiv(Rf, tr),)
            out2f = pl.pallas_call(
                functools.partial(_glu_folded_kernel, m=M, g=g, upcast=upcast),
                out_shape=jax.ShapeDtypeStruct((Rf, g * M), x.dtype),
                grid_spec=pltpu.PrefetchScalarGridSpec(
                    num_scalar_prefetch=0,
                    grid=grid,
                    in_specs=[pl.BlockSpec((tr, g * 2 * M), lambda i: (i, 0))],
                    out_specs=pl.BlockSpec((tr, g * M), lambda i: (i, 0)),
                ),
                compiler_params=pltpu.CompilerParams(
                    dimension_semantics=("parallel",),
                    vmem_limit_bytes=vmem_limit,
                ),
            )(x2f)
            out2 = out2f.reshape(R, M)
        else:
            # ---- plain unaligned fallback (budget the relayout temporaries) ----
            row_bytes = 2 * M * itemsize + 2 * M * 4 + M * itemsize
            tr = _pick_row_tile(R, row_bytes, sub_mult, total_bytes, 1,
                                block_budget)
            grid = (pl.cdiv(R, tr),)
            out2 = pl.pallas_call(
                functools.partial(_glu_fused_kernel, m=M, upcast=upcast),
                out_shape=jax.ShapeDtypeStruct((R, M), x.dtype),
                grid_spec=pltpu.PrefetchScalarGridSpec(
                    num_scalar_prefetch=0,
                    grid=grid,
                    in_specs=[pl.BlockSpec((tr, 2 * M), lambda i: (i, 0))],
                    out_specs=pl.BlockSpec((tr, M), lambda i: (i, 0)),
                ),
                compiler_params=pltpu.CompilerParams(
                    dimension_semantics=("parallel",),
                    vmem_limit_bytes=vmem_limit,
                ),
            )(x2)

    out_shape = x.shape[:axis] + (half,) + x.shape[axis + 1:]
    return out2.reshape(out_shape)


def glu_reference(x, dim=-1):
    a, b = jnp.split(x, 2, axis=dim)
    return a * jax.nn.sigmoid(b)


def _check(x, dim):
    out = glu_pallas(x, dim=dim)
    jax.block_until_ready(out)
    ref = glu_reference(x, dim=dim)
    assert out.shape == ref.shape, (out.shape, ref.shape)
    assert jnp.allclose(out, ref, atol=1e-5, rtol=1e-5), \
        f"mismatch (dim={dim}, shape={x.shape})"
    return out


if __name__ == "__main__":
    key = jax.random.PRNGKey(0)
    k1, k2, k3, k4 = jax.random.split(key, 4)

    # Primary demo: NCHW-like, split last dim (half=16 -> lane-dense folded path).
    x1 = jax.random.normal(k1, (2, 4, 16, 32), dtype=jnp.float32)
    out1 = _check(x1, dim=-1)
    assert out1.shape == (2, 4, 16, 16)

    # Lane-aligned last-dim split (half=128 -> fused contiguous path).
    x2 = jax.random.normal(k2, (2, 4, 8, 256), dtype=jnp.float32)
    _check(x2, dim=-1)

    # Channel split (dim=1, NCHW) — no transposes, fused contiguous path.
    x3 = jax.random.normal(k3, (2, 16, 8, 16), dtype=jnp.float32)
    _check(x3, dim=1)

    # Channel split with odd/small feature dim — plain fallback (R % g != 0).
    x4 = jax.random.normal(k4, (2, 6, 4, 4), dtype=jnp.float32)
    _check(x4, dim=1)

    print("KERNEL_OK")
</pallas_src>

<mosaic_0001>
module attributes {stable_mosaic.version = 11 : i64} {
  func.func @_glu_folded_kernel(%arg0: i32, %arg1: memref<16x256xf32, #tpu.memory_space<vmem>>, %arg2: memref<16x128xf32, #tpu.memory_space<vmem>>) attributes {dimension_semantics = [#tpu.dimension_semantics<parallel>], iteration_bounds = array<i64: 1>, scalar_prefetch = 0 : i64, scratch_operands = 0 : i64, tpu.core_type = #tpu.core_type<tc>, window_params = [{transform_indices = @transform_0, window_bounds = array<i64: 16, 256>}, {transform_indices = @transform_1, window_bounds = array<i64: 16, 128>}]} {
    %c0 = arith.constant 0 : index
    %c0_0 = arith.constant 0 : index
    %0 = vector.load %arg1[%c0, %c0_0] : memref<16x256xf32, #tpu.memory_space<vmem>>, vector<16x16xf32>
    %c0_1 = arith.constant 0 : index
    %c16 = arith.constant 16 : index
    %1 = vector.load %arg1[%c0_1, %c16] : memref<16x256xf32, #tpu.memory_space<vmem>>, vector<16x16xf32>
    %2 = arith.negf %1 : vector<16x16xf32>
    %3 = math.exp %2 : vector<16x16xf32>
    %cst = arith.constant 1.000000e+00 : f32
    %4 = vector.broadcast %cst : f32 to vector<16x16xf32>
    %5 = arith.addf %4, %3 : vector<16x16xf32>
    %6 = arith.divf %4, %5 : vector<16x16xf32>
    %7 = arith.mulf %0, %6 : vector<16x16xf32>
    %c0_2 = arith.constant 0 : index
    %c32 = arith.constant 32 : index
    %8 = vector.load %arg1[%c0_2, %c32] : memref<16x256xf32, #tpu.memory_space<vmem>>, vector<16x16xf32>
    %c0_3 = arith.constant 0 : index
    %c48 = arith.constant 48 : index
    %9 = vector.load %arg1[%c0_3, %c48] : memref<16x256xf32, #tpu.memory_space<vmem>>, vector<16x16xf32>
    %10 = arith.negf %9 : vector<16x16xf32>
    %11 = math.exp %10 : vector<16x16xf32>
    %cst_4 = arith.constant 1.000000e+00 : f32
    %12 = vector.broadcast %cst_4 : f32 to vector<16x16xf32>
    %13 = arith.addf %12, %11 : vector<16x16xf32>
    %14 = arith.divf %12, %13 : vector<16x16xf32>
    %15 = arith.mulf %8, %14 : vector<16x16xf32>
    %c0_5 = arith.constant 0 : index
    %c64 = arith.constant 64 : index
    %16 = vector.load %arg1[%c0_5, %c64] : memref<16x256xf32, #tpu.memory_space<vmem>>, vector<16x16xf32>
    %c0_6 = arith.constant 0 : index
    %c80 = arith.constant 80 : index
    %17 = vector.load %arg1[%c0_6, %c80] : memref<16x256xf32, #tpu.memory_space<vmem>>, vector<16x16xf32>
    %18 = arith.negf %17 : vector<16x16xf32>
    %19 = math.exp %18 : vector<16x16xf32>
    %cst_7 = arith.constant 1.000000e+00 : f32
    %20 = vector.broadcast %cst_7 : f32 to vector<16x16xf32>
    %21 = arith.addf %20, %19 : vector<16x16xf32>
    %22 = arith.divf %20, %21 : vector<16x16xf32>
    %23 = arith.mulf %16, %22 : vector<16x16xf32>
    %c0_8 = arith.constant 0 : index
    %c96 = arith.constant 96 : index
    %24 = vector.load %arg1[%c0_8, %c96] : memref<16x256xf32, #tpu.memory_space<vmem>>, vector<16x16xf32>
    %c0_9 = arith.constant 0 : index
    %c112 = arith.constant 112 : index
    %25 = vector.load %arg1[%c0_9, %c112] : memref<16x256xf32, #tpu.memory_space<vmem>>, vector<16x16xf32>
    %26 = arith.negf %25 : vector<16x16xf32>
    %27 = math.exp %26 : vector<16x16xf32>
    %cst_10 = arith.constant 1.000000e+00 : f32
    %28 = vector.broadcast %cst_10 : f32 to vector<16x16xf32>
    %29 = arith.addf %28, %27 : vector<16x16xf32>
    %30 = arith.divf %28, %29 : vector<16x16xf32>
    %31 = arith.mulf %24, %30 : vector<16x16xf32>
    %c0_11 = arith.constant 0 : index
    %c128 = arith.constant 128 : index
    %32 = vector.load %arg1[%c0_11, %c128] : memref<16x256xf32, #tpu.memory_space<vmem>>, vector<16x16xf32>
    %c0_12 = arith.constant 0 : index
    %c144 = arith.constant 144 : index
    %33 = vector.load %arg1[%c0_12, %c144] : memref<16x256xf32, #tpu.memory_space<vmem>>, vector<16x16xf32>
    %34 = arith.negf %33 : vector<16x16xf32>
    %35 = math.exp %34 : vector<16x16xf32>
    %cst_13 = arith.constant 1.000000e+00 : f32
    %36 = vector.broadcast %cst_13 : f32 to vector<16x16xf32>
    %37 = arith.addf %36, %35 : vector<16x16xf32>
    %38 = arith.divf %36, %37 : vector<16x16xf32>
    %39 = arith.mulf %32, %38 : vector<16x16xf32>
    %c0_14 = arith.constant 0 : index
    %c160 = arith.constant 160 : index
    %40 = vector.load %arg1[%c0_14, %c160] : memref<16x256xf32, #tpu.memory_space<vmem>>, vector<16x16xf32>
    %c0_15 = arith.constant 0 : index
    %c176 = arith.constant 176 : index
    %41 = vector.load %arg1[%c0_15, %c176] : memref<16x256xf32, #tpu.memory_space<vmem>>, vector<16x16xf32>
    %42 = arith.negf %41 : vector<16x16xf32>
    %43 = math.exp %42 : vector<16x16xf32>
    %cst_16 = arith.constant 1.000000e+00 : f32
    %44 = vector.broadcast %cst_16 : f32 to vector<16x16xf32>
    %45 = arith.addf %44, %43 : vector<16x16xf32>
    %46 = arith.divf %44, %45 : vector<16x16xf32>
    %47 = arith.mulf %40, %46 : vector<16x16xf32>
    %c0_17 = arith.constant 0 : index
    %c192 = arith.constant 192 : index
    %48 = vector.load %arg1[%c0_17, %c192] : memref<16x256xf32, #tpu.memory_space<vmem>>, vector<16x16xf32>
    %c0_18 = arith.constant 0 : index
    %c208 = arith.constant 208 : index
    %49 = vector.load %arg1[%c0_18, %c208] : memref<16x256xf32, #tpu.memory_space<vmem>>, vector<16x16xf32>
    %50 = arith.negf %49 : vector<16x16xf32>
    %51 = math.exp %50 : vector<16x16xf32>
    %cst_19 = arith.constant 1.000000e+00 : f32
    %52 = vector.broadcast %cst_19 : f32 to vector<16x16xf32>
    %53 = arith.addf %52, %51 : vector<16x16xf32>
    %54 = arith.divf %52, %53 : vector<16x16xf32>
    %55 = arith.mulf %48, %54 : vector<16x16xf32>
    %c0_20 = arith.constant 0 : index
    %c224 = arith.constant 224 : index
    %56 = vector.load %arg1[%c0_20, %c224] : memref<16x256xf32, #tpu.memory_space<vmem>>, vector<16x16xf32>
    %c0_21 = arith.constant 0 : index
    %c240 = arith.constant 240 : index
    %57 = vector.load %arg1[%c0_21, %c240] : memref<16x256xf32, #tpu.memory_space<vmem>>, vector<16x16xf32>
    %58 = arith.negf %57 : vector<16x16xf32>
    %59 = math.exp %58 : vector<16x16xf32>
    %cst_22 = arith.constant 1.000000e+00 : f32
    %60 = vector.broadcast %cst_22 : f32 to vector<16x16xf32>
    %61 = arith.addf %60, %59 : vector<16x16xf32>
    %62 = arith.divf %60, %61 : vector<16x16xf32>
    %63 = arith.mulf %56, %62 : vector<16x16xf32>
    %64 = tpu.concatenate %7, %15, %23, %31, %39, %47, %55, %63 in 1 : vector<16x16xf32>, vector<16x16xf32>, vector<16x16xf32>, vector<16x16xf32>, vector<16x16xf32>, vector<16x16xf32>, vector<16x16xf32>, vector<16x16xf32> -> vector<16x128xf32>
    %c0_23 = arith.constant 0 : index
    %c0_24 = arith.constant 0 : index
    %65 = vector.load %arg2[%c0_23, %c0_24] : memref<16x128xf32, #tpu.memory_space<vmem>>, vector<16x128xf32>
    tpu.vector_store %arg2[%c0_23, %c0_24], %64 {strides = array<i32>} : memref<16x128xf32, #tpu.memory_space<vmem>>, vector<16x128xf32>,
    return
  }
  func.func @transform_0(%arg0: i32) -> (i32, i32) {
    %c0_i32 = arith.constant 0 : i32
    %c0_i32_0 = arith.constant 0 : i32
    return %arg0, %c0_i32 : i32, i32
  }
  func.func @transform_1(%arg0: i32) -> (i32, i32) {
    %c0_i32 = arith.constant 0 : i32
    %c0_i32_0 = arith.constant 0 : i32
    return %arg0, %c0_i32 : i32, i32
  }
}

</mosaic_0001>

<llo_original>
// kernel: tpu_custom_call.1
$region0: #{tpu_custom_call.1}
  #allocation0 [shape = 'u32[]', space=smem, size = 0x4, offset = 0x4, fixed_abs, tag = 'smem constant byte address 0x4 - core index']
  #allocation1 [shape = 'u32[144,128]{1,0:T(1,128)}', space=vmem, size = 0x12000, scoped, tag = 'internal scratch']
  %s0 = inlined_call_operand.hbm [shape: f32[16,256], index: 0, kind: input, shape index: {}]
  %s1 = inlined_call_operand.hbm [shape: f32[16,128], index: 1, kind: output, shape index: {}]
  %s2 = sld [smem:[#allocation0]]
  $region18: #{tpu_custom_call.1} parent=0
    _
  %s4 = ssub.s32 1, %s2
  %s5 = scalar_select 0, %s4, %s2
  $region1: #{tpu_custom_call.1} parent=0
    #allocation2 [shape = 'u8[16384]{0}', space=vmem, size = 0x4000, scoped, tag = 'input window, operand 0, single buffered']
    #allocation3 [shape = 's32[1]{0}', space=sflag, size = 0x4, scoped, tag = 'scoped memory for tpu_custom_call.1']
    #allocation4 [shape = 's32[1]{0}', space=sflag, size = 0x4, scoped, tag = 'scoped memory for tpu_custom_call.1']
    #allocation5 [shape = 'u8[8192]{0}', space=vmem, size = 0x2000, scoped, tag = 'output window, operand 0, single buffered']
    %6 = vsyncpa [#allocation3], 0
    %7 = vsyncpa [#allocation4], 0
    // Predicated region
    $region2: #{tpu_custom_call.1} parent=1 // pred_check
      _
    $region3: #{tpu_custom_call.1} parent=1 // pred_check_branch
      %9 = sbr.rel (0) target = $region5
    $region4: #{tpu_custom_call.1} parent=1 // pred_region
      %s11 = ssub.s32 512, 512
      %12 = vsyncadd [#allocation3], %s11
      %s13 = sshll.u32 [#allocation2], 4
      %s14 = int_to_ptr.vmem [resolvable:$true] %s13
      %19 = dma.hbm_to_vmem [thread:$0]  %s0, 512, %s14, [#allocation3], 256, 256, 16
    $region5: #{tpu_custom_call.1} parent=1 // pred_fallthru
      _
    // Predicated region
    $region6: #{tpu_custom_call.1} parent=1 // pred_check
      _
    $region7: #{tpu_custom_call.1} parent=1 // pred_check_branch
      %21 = sbr.rel (0) target = $region9
    $region8: #{tpu_custom_call.1} parent=1 // pred_region
      %22 = dma.done [#allocation3], 512
    $region9: #{tpu_custom_call.1} parent=1 // pred_fallthru
      _
    %v23 = vld [vmem:[#allocation2] sm:$0xff]
    %v24 = vld [vmem:[#allocation2 + $0x10] sm:$0xff]
    %v25 = vxor.u32 %v23, 2147483648
    %v26 = vxor.u32 %v24, 2147483648
    %v27 = vmul.f32 %v25, 1.442695
    %v28 = vpow.pop %v27
    %v29 = vmul.f32 %v26, 1.442695
    %v30 = vpow.pop %v29
    %v31 = vadd.f32 %v28, 1.0
    %v32 = vadd.f32 %v30, 1.0
    %v33 = vrcp.pop %v31
    %v34 = vmul.f32 1.0, %v33
    %v35 = vrcp.pop %v32
    %v36 = vmul.f32 1.0, %v35
    %39 = vrot.lane.b32.xlu0 %v34, 112
    %v40 = vpop.permute.xlu0 %39
    %41 = vrot.lane.b32.xlu0 %v36, 112
    %v42 = vpop.permute.xlu0 %41
    %v45 = vmul.f32 %v23, %v40
    %v46 = vmul.f32 %v24, %v42
    %v47 = vld [vmem:[#allocation2 + $0x8] sm:$0xff]
    %v48 = vld [vmem:[#allocation2 + $0x18] sm:$0xff]
    %v49 = vxor.u32 %v47, 2147483648
    %v50 = vxor.u32 %v48, 2147483648
    %v51 = vmul.f32 %v49, 1.442695
    %v52 = vpow.pop %v51
    %v53 = vmul.f32 %v50, 1.442695
    %v54 = vpow.pop %v53
    %v55 = vadd.f32 %v52, 1.0
    %v56 = vadd.f32 %v54, 1.0
    %v57 = vrcp.pop %v55
    %v58 = vmul.f32 1.0, %v57
    %v59 = vrcp.pop %v56
    %v60 = vmul.f32 1.0, %v59
    %63 = vrot.lane.b32.xlu0 %v58, 112
    %v64 = vpop.permute.xlu0 %63
    %65 = vrot.lane.b32.xlu0 %v60, 112
    %v66 = vpop.permute.xlu0 %65
    %v69 = vmul.f32 %v47, %v64
    %v70 = vmul.f32 %v48, %v66
    %73 = vrot.lane.b32.xlu0 %v45, 112
    %v74 = vpop.permute.xlu0 %73
    %75 = vrot.lane.b32.xlu0 %v46, 112
    %v76 = vpop.permute.xlu0 %75
    %79 = vrot.lane.b32.xlu0 %v45, 96
    %v80 = vpop.permute.xlu0 %79
    %81 = vrot.lane.b32.xlu0 %v46, 96
    %v82 = vpop.permute.xlu0 %81
    %85 = vrot.lane.b32.xlu0 %v45, 80
    %v86 = vpop.permute.xlu0 %85
    %87 = vrot.lane.b32.xlu0 %v46, 80
    %v88 = vpop.permute.xlu0 %87
    %93 = vrot.lane.b32.xlu0 %v69, 64
    %v94 = vpop.permute.xlu0 %93
    %95 = vrot.lane.b32.xlu0 %v70, 64
    %v96 = vpop.permute.xlu0 %95
    %99 = vrot.lane.b32.xlu0 %v69, 48
    %v100 = vpop.permute.xlu0 %99
    %101 = vrot.lane.b32.xlu0 %v70, 48
    %v102 = vpop.permute.xlu0 %101
    %105 = vrot.lane.b32.xlu0 %v69, 32
    %v106 = vpop.permute.xlu0 %105
    %107 = vrot.lane.b32.xlu0 %v70, 32
    %v108 = vpop.permute.xlu0 %107
    %111 = vrot.lane.b32.xlu0 %v69, 16
    %v112 = vpop.permute.xlu0 %111
    %113 = vrot.lane.b32.xlu0 %v70, 16
    %v114 = vpop.permute.xlu0 %113
    %vm117 = vcmask 130048
    %v118 = vsel %vm117, %v45, %v74
    %v119 = vsel %vm117, %v46, %v76
    %vm120 = vcmask 261120
    %v121 = vsel %vm120, %v118, %v80
    %v122 = vsel %vm120, %v119, %v82
    %vm123 = vcmask 392192
    %v124 = vsel %vm123, %v121, %v86
    %v125 = vsel %vm123, %v122, %v88
    %vm126 = vcmask 523264
    %v127 = vsel %vm126, %v124, %v94
    %v128 = vsel %vm126, %v125, %v96
    %vm129 = vcmask 654336
    %v130 = vsel %vm129, %v127, %v100
    %v131 = vsel %vm129, %v128, %v102
    %vm132 = vcmask 785408
    %v133 = vsel %vm132, %v130, %v106
    %v134 = vsel %vm132, %v131, %v108
    %vm135 = vcmask 916480
    %v136 = vsel %vm135, %v133, %v112
    %v137 = vsel %vm135, %v134, %v114
    %138 = vst [vmem:[#allocation5] sm:$0xff] %v136
    %139 = vst [vmem:[#allocation5 + $0x8] sm:$0xff] %v137
    // Predicated region
    $region10: #{tpu_custom_call.1} parent=1 // pred_check
      _
    $region11: #{tpu_custom_call.1} parent=1 // pred_check_branch
      %141 = sbr.rel (0) target = $region13
    $region12: #{tpu_custom_call.1} parent=1 // pred_region
      %s143 = ssub.s32 256, 256
      %144 = vsyncadd [#allocation4], %s143
      %s145 = sshll.u32 [#allocation5], 4
      %s146 = int_to_ptr.vmem [resolvable:$true] %s145
      %151 = dma.vmem_to_hbm [thread:$0]  %s146, 256, %s1, [#allocation4], 128, 128, 8
    $region13: #{tpu_custom_call.1} parent=1 // pred_fallthru
      _
    // Predicated region
    $region14: #{tpu_custom_call.1} parent=1 // pred_check
      _
    $region15: #{tpu_custom_call.1} parent=1 // pred_check_branch
      %153 = sbr.rel (0) target = $region17
    $region16: #{tpu_custom_call.1} parent=1 // pred_region
      %154 = dma.done [#allocation4], 256
    $region17: #{tpu_custom_call.1} parent=1 // pred_fallthru
      _
    %155 = vsyncpa [#allocation3], 1
    %156 = vsyncpa [#allocation4], 1

</llo_original>
